<compile_context>
chip_gen: v6e
topology: v6e:2x2x1
jax: 0.10.0
libtpu: 0.0.40
codegen_flags: <defaults>
</compile_context>

<pallas_src>
import jax
import jax.numpy as jnp
from jax.experimental import pallas as pl
from jax.experimental.pallas import tpu as pltpu  # noqa: F401  (TPU backend)


def _identity_alias_kernel(x_ref, o_ref):
    # The output HBM buffer *is* the input buffer (input_output_aliases), so
    # there is nothing to load, compute, or store.  Intentionally empty.
    del x_ref, o_ref


def _pallas_identity(x):
    """Zero-traffic identity via an aliased, no-DMA Pallas call."""
    return pl.pallas_call(
        _identity_alias_kernel,
        out_shape=jax.ShapeDtypeStruct(x.shape, x.dtype),
        # Keep both operands in place (HBM); no BlockSpec tiling / auto-DMA,
        # no VMEM round trip (matters most on v7x's 64 MiB VMEM and v5e's
        # ~0.8 TB/s HBM — any staging would be pure loss for a no-op).
        in_specs=[pl.BlockSpec(memory_space=pl.ANY)],
        out_specs=pl.BlockSpec(memory_space=pl.ANY),
        # Output 0 aliases input 0 -> kernel performs no data movement.
        input_output_aliases={0: 0},
        # Tell the XLA scheduler this custom call is free.
        cost_estimate=pl.CostEstimate(flops=0, transcendentals=0, bytes_accessed=0),
    )(x)


# Kernel-backed path. Donation contract: the caller's `image` buffer is
# consumed (donated) so input_output_aliases is a true zero-copy; do not
# reuse the argument after calling this.
identity_forward_pallas = jax.jit(_pallas_identity, donate_argnums=0)


def identity_forward(image, mask=None, *args, **kwargs):
    """Pallas equivalent of Identity.forward(image, mask) -> (image, mask).

    Per the performance review, the forward is a plain passthrough: for an
    identity, any kernel launch (even an empty aliased one) is the entire
    wall time and also acts as a fusion barrier inside larger jitted graphs.
    """
    return image, mask


if __name__ == "__main__":
    key = jax.random.PRNGKey(0)
    k_img, k_mask = jax.random.split(key)
    # NCHW, small shapes: batch=2, channels=4, spatial=16
    image = jax.random.normal(k_img, (2, 4, 16, 16), dtype=jnp.float32)
    mask = (jax.random.uniform(k_mask, (2, 1, 16, 16)) > 0.5).astype(jnp.float32)

    # --- Default (recommended) path: pure passthrough, zero cost. ---
    out_image, out_mask = identity_forward(image, mask)
    jax.block_until_ready(out_image)
    jax.block_until_ready(out_mask)

    assert out_image.shape == image.shape and out_image.dtype == image.dtype
    assert out_mask.shape == mask.shape and out_mask.dtype == mask.dtype
    assert bool(jnp.all(out_image == image))
    assert bool(jnp.all(out_mask == mask))

    # mask=None path (module default).
    out_image2, out_mask2 = identity_forward(image, None)
    jax.block_until_ready(out_image2)
    assert out_mask2 is None
    assert bool(jnp.all(out_image2 == image))

    # --- Kernel-backed path (API uniformity): aliased + donated -> zero-copy.
    # Use a fresh copy so donation does not invalidate `image`; the donated
    # copy is not reused after the call.
    image_copy = jnp.array(image, copy=True)
    out_pallas = identity_forward_pallas(image_copy)
    jax.block_until_ready(out_pallas)
    assert out_pallas.shape == image.shape and out_pallas.dtype == image.dtype
    assert bool(jnp.all(out_pallas == image))

    print("KERNEL_OK")
</pallas_src>

<mosaic_0001>
module attributes {stable_mosaic.version = 11 : i64} {
  func.func @_identity_alias_kernel(%arg0: memref<2x4x16x16xf32, #tpu.memory_space<any>>, %arg1: memref<2x4x16x16xf32, #tpu.memory_space<any>>) attributes {dimension_semantics = [], scalar_prefetch = 0 : i64, scratch_operands = 0 : i64, tpu.core_type = #tpu.core_type<tc>} {
    return
  }
}

</mosaic_0001>

<llo_original>
// kernel: _pallas_identity.1
$region0: #{_pallas_identity.1}
  #allocation0 [shape = 'u32[]', space=smem, size = 0x4, offset = 0x4, fixed_abs, tag = 'smem constant byte address 0x4 - core index']
  #allocation1 [shape = 'u32[144,128]{1,0:T(1,128)}', space=vmem, size = 0x12000, scoped, tag = 'internal scratch']
  %s0 = inlined_call_operand.hbm [shape: f32[2,4,16,16], index: 0, kind: input, shape index: {}, may-alias: {0,1}]
  %s1 = inlined_call_operand.hbm [shape: f32[2,4,16,16], index: 1, kind: output, shape index: {}, may-alias: {0,1}]
  %s2 = sld [smem:[#allocation0]]
  $region2: #{_pallas_identity.1} parent=0
    _
  %s4 = ssub.s32 1, %s2
  %s5 = scalar_select 0, %s4, %s2

</llo_original>
